<compile_context>
chip_gen: v5e
topology: v5e:2x2
jax: 0.10.0
libtpu: 0.0.40
codegen_flags: <defaults>
</compile_context>

<pallas_src>
import math

import jax
import jax.numpy as jnp
from jax import lax
from jax.experimental import pallas as pl
from jax.experimental.pallas import tpu as pltpu


def _binary_linear_kernel(x_ref, w_ref, b_ref, o_ref, acc_ref):
    """Computes one (tm, tn) output tile; K is reduced along grid axis 2.

    x_ref:   (tm, tk)  bf16 activation tile
    w_ref:   (tn, tk)  int8 pre-binarized weight tile (PyTorch [N, K] layout)
    b_ref:   (1,  tn)  f32 bias tile
    o_ref:   (tm, tn)  output tile (activation dtype)
    acc_ref: (tm, tn)  f32 accumulator, resident across the K axis
    """
    k = pl.program_id(2)

    @pl.when(k == 0)
    def _():
        # Seed the accumulator with the bias so the epilogue is just cast+store.
        acc_ref[...] = jnp.broadcast_to(
            b_ref[...].astype(jnp.float32), acc_ref.shape
        )

    # int8 {-1,0,+1} -> bf16 is exact; the convert is VPU work hidden under DMA.
    w = w_ref[...].astype(jnp.bfloat16)

    # Contract on the last dim of both operands (x @ w.T): MXU trans_b path,
    # no in-kernel transpose, f32 accumulation.
    acc_ref[...] += lax.dot_general(
        x_ref[...],
        w,
        dimension_numbers=(((1,), (1,)), ((), ())),
        preferred_element_type=jnp.float32,
    )

    @pl.when(k == pl.num_programs(2) - 1)
    def _():
        o_ref[...] = acc_ref[...].astype(o_ref.dtype)


def _round_up(x, m):
    return ((x + m - 1) // m) * m


def _pick_mn_tile(dim):
    # Big, MXU/lane-aligned tiles when the dim allows; otherwise one full block.
    for c in (512, 256, 128):
        if dim >= c:
            return c
    return dim  # tiny dim: single block equal to the full extent (allowed)


def _pick_k_tile(k_pad):
    # k_pad is always a 128-multiple; pick the largest tile that divides it.
    for c in (512, 256, 128):
        if k_pad % c == 0:
            return c
    return 128  # unreachable


def binary_linear(x, weight, bias):
    """Forward of BinaryLinear: x @ sign(weight).T + bias.

    x: [..., K] float, weight: [N, K], bias: [N] -> [..., N].
    """
    *lead, K = x.shape
    N, Kw = weight.shape
    assert K == Kw
    M = int(math.prod(lead)) if lead else 1

    # Binarize + pack ONCE per call.  {-1, 0, +1} is exact in int8/bf16.
    # TODO(synk): in a real model, precompute sign(weight).astype(int8) at
    # parameter-update time instead of every forward to drop this extra pass.
    w_bin = jnp.sign(weight).astype(jnp.int8)            # (N, K) int8
    x2d = x.reshape(M, K).astype(jnp.bfloat16)           # bf16 MXU inputs
    bias2d = bias.reshape(1, N).astype(jnp.float32)      # f32, seeds the f32 acc

    # Zero-pad K to a 128-multiple so the reduction axis always tiles exactly
    # (zeros contribute nothing to the dot product).
    k_pad = _round_up(max(K, 128), 128)
    if k_pad != K:
        x2d = jnp.pad(x2d, ((0, 0), (0, k_pad - K)))
        w_bin = jnp.pad(w_bin, ((0, 0), (0, k_pad - K)))

    tm = _pick_mn_tile(M)
    tn = _pick_mn_tile(N)
    # v7x has 2 TensorCores: if M fits in a single block, make sure the N axis
    # has >= 2 "parallel" blocks so the second core gets work (no-op on v5e/v6e).
    if pl.cdiv(M, tm) == 1 and N >= 256 and pl.cdiv(N, tn) == 1:
        tn = _round_up(pl.cdiv(N, 2), 128)
    tk = _pick_k_tile(k_pad)

    grid = (pl.cdiv(M, tm), pl.cdiv(N, tn), k_pad // tk)

    # VMEM budget: double-buffered bf16 x, int8 w, bias, out tiles + f32 acc.
    out_itemsize = jnp.dtype(x.dtype).itemsize
    vmem_needed = (
        2 * tm * tk * 2          # x tiles (bf16)
        + 2 * tn * tk * 1        # w tiles (int8)
        + 2 * 1 * tn * 4         # bias tiles (f32)
        + 2 * tm * tn * out_itemsize  # output tiles
        + tm * tn * 4            # f32 accumulator
    )
    vmem_limit = min(max(2 * vmem_needed, 32 * 1024 * 1024), 64 * 1024 * 1024)

    out = pl.pallas_call(
        _binary_linear_kernel,
        out_shape=jax.ShapeDtypeStruct((M, N), x.dtype),
        grid_spec=pltpu.PrefetchScalarGridSpec(
            num_scalar_prefetch=0,
            grid=grid,
            in_specs=[
                pl.BlockSpec((tm, tk), lambda i, j, k: (i, k)),   # activations
                pl.BlockSpec((tn, tk), lambda i, j, k: (j, k)),   # int8 weights
                pl.BlockSpec((1, tn), lambda i, j, k: (0, j)),    # bias
            ],
            out_specs=pl.BlockSpec((tm, tn), lambda i, j, k: (i, j)),
            scratch_shapes=[pltpu.VMEM((tm, tn), jnp.float32)],
        ),
        compiler_params=pltpu.CompilerParams(
            dimension_semantics=("parallel", "parallel", "arbitrary"),
            vmem_limit_bytes=vmem_limit,
        ),
    )(x2d, w_bin, bias2d)

    return out.reshape(*lead, N)


if __name__ == "__main__":
    # Small shapes consistent with the module: (batch=2, seq=8, in=32) -> out=64
    batch, seq, in_features, out_features = 2, 8, 32, 64

    key = jax.random.PRNGKey(0)
    kx, kw = jax.random.split(key)

    x = jax.random.normal(kx, (batch, seq, in_features), dtype=jnp.float32)
    # reset_parameters(): weight ~ N(0, sqrt(1/in_features)), bias = 0
    weight = jax.random.normal(
        kw, (out_features, in_features), dtype=jnp.float32
    ) * math.sqrt(1.0 / in_features)
    bias = jnp.zeros((out_features,), dtype=jnp.float32)

    out = binary_linear(x, weight, bias)
    out = jax.block_until_ready(out)
    assert out.shape == (batch, seq, out_features)

    # Reference with the same activation quantization as the kernel (bf16 MXU
    # inputs, f32 accumulation; sign(weight) is exact in bf16/int8).
    x_q = x.astype(jnp.bfloat16).astype(jnp.float32)
    ref_q = jnp.matmul(x_q, jnp.sign(weight).T) + bias
    assert jnp.allclose(out, ref_q, atol=2e-3, rtol=2e-3)

    # Loose check against the exact f32 PyTorch semantics (the bf16 activation
    # cast is the only lossy step).
    ref_f32 = jnp.matmul(x, jnp.sign(weight).T) + bias
    assert jnp.allclose(out, ref_f32, atol=1e-1, rtol=1e-1)

    print("KERNEL_OK")
</pallas_src>

<mosaic_0001>
module attributes {stable_mosaic.version = 11 : i64} {
  func.func @_binary_linear_kernel(%arg0: i32, %arg1: i32, %arg2: i32, %arg3: memref<16x128xbf16, #tpu.memory_space<vmem>>, %arg4: memref<64x128xi8, #tpu.memory_space<vmem>>, %arg5: memref<1x64xf32, #tpu.memory_space<vmem>>, %arg6: memref<16x64xf32, #tpu.memory_space<vmem>>, %arg7: memref<16x64xf32, #tpu.memory_space<vmem>>) attributes {dimension_semantics = [#tpu.dimension_semantics<parallel>, #tpu.dimension_semantics<parallel>, #tpu.dimension_semantics<arbitrary>], iteration_bounds = array<i64: 1, 1, 1>, scalar_prefetch = 0 : i64, scratch_operands = 1 : i64, tpu.core_type = #tpu.core_type<tc>, window_params = [{transform_indices = @transform_0, window_bounds = array<i64: 16, 128>}, {transform_indices = @transform_1, window_bounds = array<i64: 64, 128>}, {transform_indices = @transform_2, window_bounds = array<i64: 1, 64>}, {transform_indices = @transform_3, window_bounds = array<i64: 16, 64>}]} {
    %c0_i32 = arith.constant 0 : i32
    %0 = arith.cmpi eq, %arg2, %c0_i32 : i32
    %1 = arith.extui %0 : i1 to i32
    %c0_i32_0 = arith.constant 0 : i32
    %2 = arith.cmpi ne, %1, %c0_i32_0 : i32
    scf.if %2 {
      %c0_10 = arith.constant 0 : index
      %c0_11 = arith.constant 0 : index
      %13 = vector.load %arg5[%c0_10, %c0_11] : memref<1x64xf32, #tpu.memory_space<vmem>>, vector<1x64xf32>
      %14 = vector.shape_cast %13 : vector<1x64xf32> to vector<1x64xf32>
      %15 = vector.broadcast %14 : vector<1x64xf32> to vector<16x64xf32>
      %c0_12 = arith.constant 0 : index
      %c0_13 = arith.constant 0 : index
      %16 = vector.load %arg7[%c0_12, %c0_13] : memref<16x64xf32, #tpu.memory_space<vmem>>, vector<16x64xf32>
      tpu.vector_store %arg7[%c0_12, %c0_13], %15 {strides = array<i32>} : memref<16x64xf32, #tpu.memory_space<vmem>>, vector<16x64xf32>,
    } else {
    }
    %c0 = arith.constant 0 : index
    %c0_1 = arith.constant 0 : index
    %3 = vector.load %arg4[%c0, %c0_1] : memref<64x128xi8, #tpu.memory_space<vmem>>, vector<64x128xi8>
    %4 = arith.sitofp %3 : vector<64x128xi8> to vector<64x128xbf16>
    %c0_2 = arith.constant 0 : index
    %c0_3 = arith.constant 0 : index
    %5 = vector.load %arg7[%c0_2, %c0_3] : memref<16x64xf32, #tpu.memory_space<vmem>>, vector<16x64xf32>
    %c0_4 = arith.constant 0 : index
    %c0_5 = arith.constant 0 : index
    %6 = vector.load %arg3[%c0_4, %c0_5] : memref<16x128xbf16, #tpu.memory_space<vmem>>, vector<16x128xbf16>
    %cst = arith.constant dense<0.000000e+00> : vector<16x64xf32>
    %7 = tpu.matmul %6, %4, %cst {dimension_numbers = #tpu.dot_dimension_numbers<[1], [1], [0], [0], [0, 0, 1, 0], [], []>} : vector<16x128xbf16>, vector<64x128xbf16>, vector<16x64xf32> -> vector<16x64xf32>
    %8 = arith.addf %5, %7 : vector<16x64xf32>
    %c0_6 = arith.constant 0 : index
    %c0_7 = arith.constant 0 : index
    %9 = vector.load %arg7[%c0_6, %c0_7] : memref<16x64xf32, #tpu.memory_space<vmem>>, vector<16x64xf32>
    tpu.vector_store %arg7[%c0_6, %c0_7], %8 {strides = array<i32>} : memref<16x64xf32, #tpu.memory_space<vmem>>, vector<16x64xf32>,
    %c0_i32_8 = arith.constant 0 : i32
    %10 = arith.cmpi eq, %arg2, %c0_i32_8 : i32
    %11 = arith.extui %10 : i1 to i32
    %c0_i32_9 = arith.constant 0 : i32
    %12 = arith.cmpi ne, %11, %c0_i32_9 : i32
    scf.if %12 {
      %c0_10 = arith.constant 0 : index
      %c0_11 = arith.constant 0 : index
      %13 = vector.load %arg7[%c0_10, %c0_11] : memref<16x64xf32, #tpu.memory_space<vmem>>, vector<16x64xf32>
      %c0_12 = arith.constant 0 : index
      %c0_13 = arith.constant 0 : index
      %14 = vector.load %arg6[%c0_12, %c0_13] : memref<16x64xf32, #tpu.memory_space<vmem>>, vector<16x64xf32>
      tpu.vector_store %arg6[%c0_12, %c0_13], %13 {strides = array<i32>} : memref<16x64xf32, #tpu.memory_space<vmem>>, vector<16x64xf32>,
    } else {
    }
    return
  }
  func.func @transform_0(%arg0: i32, %arg1: i32, %arg2: i32) -> (i32, i32) {
    %c0_i32 = arith.constant 0 : i32
    return %arg0, %arg2 : i32, i32
  }
  func.func @transform_1(%arg0: i32, %arg1: i32, %arg2: i32) -> (i32, i32) {
    %c0_i32 = arith.constant 0 : i32
    return %arg1, %arg2 : i32, i32
  }
  func.func @transform_2(%arg0: i32, %arg1: i32, %arg2: i32) -> (i32, i32) {
    %c0_i32 = arith.constant 0 : i32
    %c0_i32_0 = arith.constant 0 : i32
    return %c0_i32, %arg1 : i32, i32
  }
  func.func @transform_3(%arg0: i32, %arg1: i32, %arg2: i32) -> (i32, i32) {
    %c0_i32 = arith.constant 0 : i32
    return %arg0, %arg1 : i32, i32
  }
}

</mosaic_0001>

<llo_original>
// kernel: tpu_custom_call.1
$region0: #{tpu_custom_call.1}
  #allocation0 [shape = 'u32[]', space=smem, size = 0x4, offset = 0x4, fixed_abs, tag = 'smem constant byte address 0x4 - core index']
  #allocation1 [shape = 'u32[72,128]{1,0:T(1,128)}', space=vmem, size = 0x9000, scoped, tag = 'internal scratch']
  #allocation2 [shape = 'f32[16,64]{1,0:T(8,128)}', space=vmem, size = 0x2000, scoped, tag = 'scratch operand']
  %s0 = inlined_call_operand.hbm [shape: bf16[16,128], index: 0, kind: input, shape index: {}]
  %s1 = inlined_call_operand.hbm [shape: s8[64,128], index: 1, kind: input, shape index: {}]
  %s2 = inlined_call_operand.vmem [shape: f32[1,64], index: 2, kind: input, shape index: {}]
  %s3 = inlined_call_operand.hbm [shape: f32[16,64], index: 3, kind: output, shape index: {}]
  %s4 = sld [smem:[#allocation0]]
  $region38: #{tpu_custom_call.1} parent=0
    _
  %s6 = ssub.s32 1, %s4
  %s7 = scalar_select 0, %s6, %s4
  $region1: #{tpu_custom_call.1} parent=0
    #allocation3 [shape = 'u8[4096]{0}', space=vmem, size = 0x1000, scoped, tag = 'input window, operand 0, single buffered']
    #allocation4 [shape = 's32[1]{0}', space=sflag, size = 0x4, scoped, tag = 'scoped memory for tpu_custom_call.1']
    #allocation5 [shape = 's32[1]{0}', space=sflag, size = 0x4, scoped, tag = 'scoped memory for tpu_custom_call.1']
    #allocation6 [shape = 'u8[8192]{0}', space=vmem, size = 0x2000, scoped, tag = 'input window, operand 1, single buffered']
    #allocation7 [shape = 's32[1]{0}', space=sflag, size = 0x4, scoped, tag = 'scoped memory for tpu_custom_call.1']
    #allocation8 [shape = 'u8[8192]{0}', space=vmem, size = 0x2000, scoped, tag = 'output window, operand 0, single buffered']
    %8 = vsyncpa [#allocation4], 0
    %9 = vsyncpa [#allocation7], 0
    %10 = vsyncpa [#allocation5], 0
    // Predicated region
    $region2: #{tpu_custom_call.1} parent=1 // pred_check
      _
    $region3: #{tpu_custom_call.1} parent=1 // pred_check_branch
      %12 = sbr.rel (0) target = $region5
    $region4: #{tpu_custom_call.1} parent=1 // pred_region
      %14 = vsyncadd [#allocation4], 0
      %s15 = sshll.u32 %s0, 4
      %s16 = int_to_ptr.hbm [resolvable:$true] %s15
      %s17 = sshll.u32 [#allocation3], 4
      %s18 = int_to_ptr.vmem [resolvable:$true] %s17
      %23 = dma.hbm_to_vmem [thread:$0]  %s16, 128, %s18, [#allocation4], 64, 64, 4
    $region5: #{tpu_custom_call.1} parent=1 // pred_fallthru
      _
    // Predicated region
    $region6: #{tpu_custom_call.1} parent=1 // pred_check
      _
    $region7: #{tpu_custom_call.1} parent=1 // pred_check_branch
      %25 = sbr.rel (0) target = $region9
    $region8: #{tpu_custom_call.1} parent=1 // pred_region
      %27 = vsyncadd [#allocation7], 0
      %s28 = sshll.u32 %s1, 4
      %s29 = int_to_ptr.hbm [resolvable:$true] %s28
      %s30 = sshll.u32 [#allocation6], 4
      %s31 = int_to_ptr.vmem [resolvable:$true] %s30
      %36 = dma.hbm_to_vmem [thread:$0]  %s29, 256, %s31, [#allocation7], 128, 128, 8
    $region9: #{tpu_custom_call.1} parent=1 // pred_fallthru
      _
    // Predicated region
    $region10: #{tpu_custom_call.1} parent=1 // pred_check
      _
    $region11: #{tpu_custom_call.1} parent=1 // pred_check_branch
      %38 = sbr.rel (0) target = $region13
    $region12: #{tpu_custom_call.1} parent=1 // pred_region
      _
    $region13: #{tpu_custom_call.1} parent=1 // pred_fallthru
      _
    // Predicated region
    $region14: #{tpu_custom_call.1} parent=1 // pred_check
      _
    $region15: #{tpu_custom_call.1} parent=1 // pred_check_branch
      %40 = sbr.rel (0) target = $region17
    $region16: #{tpu_custom_call.1} parent=1 // pred_region
      %42 = dma.done [#allocation4], 128
    $region17: #{tpu_custom_call.1} parent=1 // pred_fallthru
      _
    // Predicated region
    $region18: #{tpu_custom_call.1} parent=1 // pred_check
      _
    $region19: #{tpu_custom_call.1} parent=1 // pred_check_branch
      %44 = sbr.rel (0) target = $region21
    $region20: #{tpu_custom_call.1} parent=1 // pred_region
      %46 = dma.done [#allocation7], 256
    $region21: #{tpu_custom_call.1} parent=1 // pred_fallthru
      _
    %p48 = scmp.eq.s32.totalorder 0, 0
    // Predicated region
    $region22: #{tpu_custom_call.1} parent=1 // pred_check
      %p49 = pneg %p48
    $region23: #{tpu_custom_call.1} parent=1 // pred_check_branch
      %51 = sbr.rel (%p49) target = $region25
    $region24: #{tpu_custom_call.1} parent=1 // pred_region
      %v52 = vld [vmem:[%s2] sm:$0x1]
      %v54 = vperm.slane %v52, 0
      %vm56 = vcmask 523264
      %57 = vst.msk [vmem:[#allocation2] sm:$0xff] %vm56, %v54
      %58 = vst.msk [vmem:[#allocation2 + $0x8] sm:$0xff] %vm56, %v54
    $region25: #{tpu_custom_call.1} parent=1 // pred_fallthru
      _
    %v59 = vld [vmem:[#allocation6] sm:$0xff]
    %v60 = vld [vmem:[#allocation6 + $0x8] sm:$0xff]
    %v61 = vunpack.c.0.s8 %v59
    %v62 = vunpack.c.1.s8 %v59
    %v63 = vunpack.c.2.s8 %v59
    %v64 = vunpack.c.3.s8 %v59
    %v65 = vunpack.c.0.s8 %v60
    %v66 = vunpack.c.1.s8 %v60
    %v67 = vunpack.c.2.s8 %v60
    %v68 = vunpack.c.3.s8 %v60
    %v69 = vcvt.s32.f32 %v61
    %v70 = vcvt.s32.f32 %v62
    %v71 = vcvt.s32.f32 %v63
    %v72 = vcvt.s32.f32 %v64
    %v73 = vcvt.s32.f32 %v65
    %v74 = vcvt.s32.f32 %v66
    %v75 = vcvt.s32.f32 %v67
    %v76 = vcvt.s32.f32 %v68
    %v77 = vpack.c.bf16 %v70, %v69
    %v78 = vpack.c.bf16 %v72, %v71
    %v79 = vpack.c.bf16 %v74, %v73
    %v80 = vpack.c.bf16 %v76, %v75
    %v81 = vld [vmem:[#allocation2] sm:$0xff]
    %v82 = vld [vmem:[#allocation2 + $0x8] sm:$0xff]
    %v83 = vld [vmem:[#allocation3] sm:$0xf]
    %v84 = vld [vmem:[#allocation3 + $0x4] sm:$0xf]
    %v87 = vunpack.c.l.b16 %v83
    %v88 = vunpack.c.l.b16 %v84
    %v89 = vpack.c.b16 %v88, %v87
    %91 = vmatpush.bf16.xpose.msra.mxu0 0
    %92 = vmatpush.bf16.xpose.msra.mxu0 0
    %93 = vmatpush.bf16.xpose.msra.mxu0 0
    %94 = vmatpush.bf16.xpose.msra.mxu0 0
    %95 = vmatpush.bf16.xpose.msra.mxu0 %v80
    %96 = vmatpush.bf16.xpose.msra.mxu0 %v79
    %97 = vmatpush.bf16.xpose.msra.mxu0 %v78
    %98 = vmatpush.bf16.xpose.msra.mxu0 %v77
    %99 = vmatmul.bf16.gmra.mxu0 %v89
    %v100 = vpop.f32.mrf.mxu0
    %v101 = vadd.f32 0.0, %v100
    %v102 = vpop.f32.mrf.mxu0
    %v103 = vadd.f32 0.0, %v102
    %104 = vdwg.mxu0
    %v105 = vadd.f32 %v81, %v101
    %v106 = vadd.f32 %v82, %v103
    %vm107 = vcmask 523264
    %108 = vst.msk [vmem:[#allocation2] sm:$0xff] %vm107, %v105
    %109 = vst.msk [vmem:[#allocation2 + $0x8] sm:$0xff] %vm107, %v106
    // Predicated region
    $region26: #{tpu_custom_call.1} parent=1 // pred_check
      %p110 = pneg %p48
    $region27: #{tpu_custom_call.1} parent=1 // pred_check_branch
      %112 = sbr.rel (%p110) target = $region29
    $region28: #{tpu_custom_call.1} parent=1 // pred_region
      %v113 = vld [vmem:[#allocation2] sm:$0xff]
      %v114 = vld [vmem:[#allocation2 + $0x8] sm:$0xff]
      %115 = vst.msk [vmem:[#allocation8] sm:$0xff] %vm107, %v113
      %116 = vst.msk [vmem:[#allocation8 + $0x8] sm:$0xff] %vm107, %v114
    $region29: #{tpu_custom_call.1} parent=1 // pred_fallthru
      _
    // Predicated region
    $region30: #{tpu_custom_call.1} parent=1 // pred_check
      _
    $region31: #{tpu_custom_call.1} parent=1 // pred_check_branch
      %118 = sbr.rel (0) target = $region33
    $region32: #{tpu_custom_call.1} parent=1 // pred_region
      %120 = vsyncadd [#allocation5], 0
      %s121 = sshll.u32 [#allocation8], 4
      %s122 = int_to_ptr.vmem [resolvable:$true] %s121
      %s123 = sshll.u32 %s3, 4
      %s124 = int_to_ptr.hbm [resolvable:$true] %s123
      %129 = dma.vmem_to_hbm [thread:$0]  %s122, 256, %s124, [#allocation5], 128, 128, 8
    $region33: #{tpu_custom_call.1} parent=1 // pred_fallthru
      _
    // Predicated region
    $region34: #{tpu_custom_call.1} parent=1 // pred_check
      _
    $region35: #{tpu_custom_call.1} parent=1 // pred_check_branch
      %131 = sbr.rel (0) target = $region37
    $region36: #{tpu_custom_call.1} parent=1 // pred_region
      %133 = dma.done [#allocation5], 256
    $region37: #{tpu_custom_call.1} parent=1 // pred_fallthru
      _
    %134 = vsyncpa [#allocation4], 1
    %135 = vsyncpa [#allocation7], 1
    %136 = vsyncpa [#allocation5], 1

</llo_original>
